<compile_context>
chip_gen: v7x
topology: tpu7x:2x2x1
jax: 0.10.0
libtpu: 0.0.40
codegen_flags: <defaults>
</compile_context>

<pallas_src>
import math
import functools

import jax
import jax.numpy as jnp
from jax.experimental import pallas as pl
from jax.experimental.pallas import tpu as pltpu

EPS = 1e-5  # matches torch.nn.LayerNorm default
VMEM_LIMIT = 48 * 1024 * 1024  # explicit scoped-VMEM cap, safe on v5e/v6e/v7x


def _layernorm(x, gamma, beta):
    # f32 statistics
    mean = jnp.mean(x, axis=-1, keepdims=True)
    var = jnp.mean((x - mean) ** 2, axis=-1, keepdims=True)
    return (x - mean) * jax.lax.rsqrt(var + EPS) * gamma + beta


# ---------------------------------------------------------------------------
# Kernel 1: history tokenizer  (LayerNorm(H*A) -> Linear(H*A, H*E))
# ---------------------------------------------------------------------------
def history_tokenizer_kernel(h_ref, g_ref, b_ref, w_ref, bias_ref, o_ref):
    ln = _layernorm(h_ref[...], g_ref[...], b_ref[...])
    o_ref[...] = (
        jnp.dot(ln.astype(jnp.bfloat16), w_ref[...],
                preferred_element_type=jnp.float32)
        + bias_ref[...]
    )


def history_tokenizer(history_flat, g, b, w, bias):
    N, HA = history_flat.shape
    HE = w.shape[1]
    return pl.pallas_call(
        history_tokenizer_kernel,
        out_shape=jax.ShapeDtypeStruct((N, HE), jnp.float32),
        grid=(1,),
        in_specs=[
            pl.BlockSpec((N, HA), lambda i: (0, 0)),
            pl.BlockSpec((1, HA), lambda i: (0, 0)),
            pl.BlockSpec((1, HA), lambda i: (0, 0)),
            pl.BlockSpec((HA, HE), lambda i: (0, 0)),
            pl.BlockSpec((1, HE), lambda i: (0, 0)),
        ],
        out_specs=pl.BlockSpec((N, HE), lambda i: (0, 0)),
        compiler_params=pltpu.CompilerParams(dimension_semantics=("arbitrary",)),
    )(history_flat, g, b, w, bias)


# ---------------------------------------------------------------------------
# Kernel 2: fused transformer stack.
# grid=(num_layers,) "arbitrary"; activations resident in the output VMEM block;
# per-layer weights streamed via stacked arrays (leading layer axis squeezed).
# ---------------------------------------------------------------------------
def stack_kernel(
    x_ref, g1_ref, b1_ref, wqkv_ref, wo_ref,
    g2_ref, b2_ref, w1_ref, bb1_ref, w2_ref, bb2_ref,
    o_ref, *, num_heads, head_dim, batch, seq,
):
    layer = pl.program_id(0)

    # Layer 0: load the input activations into the resident carry.
    @pl.when(layer == 0)
    def _():
        o_ref[...] = x_ref[...]

    x = o_ref[...]                                  # (N*L, E) f32 carry
    N, L = batch, seq
    HD = num_heads * head_dim

    # ---- pre-norm attention -------------------------------------------------
    ln1 = _layernorm(x, g1_ref[...], b1_ref[...])
    # fused QKV projection: one wide MXU matmul with M = N*L
    qkv = jnp.dot(ln1.astype(jnp.bfloat16), wqkv_ref[...],
                  preferred_element_type=jnp.float32)          # (N*L, 3*HD)
    q = qkv[:, :HD].reshape(N, L, HD)
    k = qkv[:, HD:2 * HD].reshape(N, L, HD)
    v = qkv[:, 2 * HD:].reshape(N, L, HD)

    row = jax.lax.broadcasted_iota(jnp.int32, (1, L, L), 1)
    col = jax.lax.broadcasted_iota(jnp.int32, (1, L, L), 2)
    causal = col <= row                                         # (1, L, L)

    # Heads: static unroll, each head a 3-D contraction batched over N.
    # (1/sqrt(head_dim) is already folded into the Q columns of wqkv.)
    head_outs = []
    for h in range(num_heads):
        sl = slice(h * head_dim, (h + 1) * head_dim)
        qh = q[:, :, sl].astype(jnp.bfloat16)
        kh = k[:, :, sl].astype(jnp.bfloat16)
        vh = v[:, :, sl].astype(jnp.bfloat16)
        s = jnp.einsum("nld,nmd->nlm", qh, kh,
                       preferred_element_type=jnp.float32)      # (N, L, L) f32
        s = jnp.where(causal, s, jnp.float32(-1e30))
        m = jnp.max(s, axis=-1, keepdims=True)
        p = jnp.exp(s - m)
        p = p * pl.reciprocal(jnp.sum(p, axis=-1, keepdims=True), approx=True)
        head_outs.append(
            jnp.einsum("nlm,nmd->nld", p.astype(jnp.bfloat16), vh,
                       preferred_element_type=jnp.float32))
    attn = jnp.concatenate(head_outs, axis=-1).reshape(N * L, HD)

    attn_out = jnp.dot(attn.astype(jnp.bfloat16), wo_ref[...],
                       preferred_element_type=jnp.float32) + x

    # ---- pre-norm feed-forward ---------------------------------------------
    ln2 = _layernorm(attn_out, g2_ref[...], b2_ref[...])
    h1 = jnp.dot(ln2.astype(jnp.bfloat16), w1_ref[...],
                 preferred_element_type=jnp.float32) + bb1_ref[...]
    h1 = jax.nn.gelu(h1, approximate=False)         # matches nn.GELU() (exact)
    h2 = jnp.dot(h1.astype(jnp.bfloat16), w2_ref[...],
                 preferred_element_type=jnp.float32) + bb2_ref[...]

    o_ref[...] = h2 + attn_out                      # resident carry / final out


def transformer_stack(x2, params, *, num_heads, head_dim, batch, seq):
    NL, E = x2.shape
    HD = num_heads * head_dim
    F = params["w1"].shape[-1]
    num_layers = params["wqkv"].shape[0]

    kernel = functools.partial(
        stack_kernel, num_heads=num_heads, head_dim=head_dim,
        batch=batch, seq=seq,
    )
    wspec = lambda *dims: pl.BlockSpec((None,) + dims, lambda l: (l, 0, 0))
    return pl.pallas_call(
        kernel,
        out_shape=jax.ShapeDtypeStruct((NL, E), jnp.float32),
        grid=(num_layers,),
        in_specs=[
            pl.BlockSpec((NL, E), lambda l: (0, 0)),   # activations (fetched once)
            wspec(1, E),                               # ln1 gamma
            wspec(1, E),                               # ln1 beta
            wspec(E, 3 * HD),                          # fused Wqkv (bf16)
            wspec(HD, E),                              # Wo (bf16)
            wspec(1, E),                               # ln2 gamma
            wspec(1, E),                               # ln2 beta
            wspec(E, F),                               # W1 (bf16)
            wspec(1, F),                               # b1
            wspec(F, E),                               # W2 (bf16)
            wspec(1, E),                               # b2
        ],
        out_specs=pl.BlockSpec((NL, E), lambda l: (0, 0)),  # resident across layers
        compiler_params=pltpu.CompilerParams(
            dimension_semantics=("arbitrary",),
            vmem_limit_bytes=VMEM_LIMIT,
        ),
    )(x2, params["ln1_g"], params["ln1_b"], params["wqkv"], params["wo"],
      params["ln2_g"], params["ln2_b"], params["w1"], params["b1"],
      params["w2"], params["b2"])


# ---------------------------------------------------------------------------
# Kernel 3: decode head  (LayerNorm -> x @ Emb^T / T -> softmax), vocab tiled.
# ---------------------------------------------------------------------------
def decode_kernel(x_ref, g_ref, b_ref, embT_ref, o_ref, *, v_tile):
    vi = pl.program_id(0)
    # LN recompute per vocab tile is cheap relative to the (R,E)x(E,Vt) matmul.
    ln = _layernorm(x_ref[...], g_ref[...], b_ref[...])  # temp folded into g/b
    logits = jnp.dot(ln.astype(jnp.bfloat16), embT_ref[...],
                     preferred_element_type=jnp.float32)
    start = pl.multiple_of(vi * v_tile, v_tile)
    o_ref[:, pl.ds(start, v_tile)] = logits

    # After the last vocab tile, the full logits row lives in the resident
    # output block: apply the softmax in place.
    @pl.when(vi == pl.num_programs(0) - 1)
    def _():
        full = o_ref[...]
        m = jnp.max(full, axis=-1, keepdims=True)
        p = jnp.exp(full - m)
        o_ref[...] = p * pl.reciprocal(jnp.sum(p, axis=-1, keepdims=True))


def _pick_v_tile(V, max_tile=512):
    if V <= max_tile:
        return V
    t = max_tile
    while t >= 128:
        if V % t == 0:
            return t
        t -= 128
    return V


def decode_head(latents_flat, g, b, embT):
    R, E = latents_flat.shape
    V = embT.shape[1]
    v_tile = _pick_v_tile(V)
    num_v = V // v_tile
    kernel = functools.partial(decode_kernel, v_tile=v_tile)
    return pl.pallas_call(
        kernel,
        out_shape=jax.ShapeDtypeStruct((R, V), jnp.float32),
        grid=(num_v,),
        in_specs=[
            pl.BlockSpec((R, E), lambda v: (0, 0)),
            pl.BlockSpec((1, E), lambda v: (0, 0)),
            pl.BlockSpec((1, E), lambda v: (0, 0)),
            pl.BlockSpec((E, v_tile), lambda v: (0, v)),   # stream vocab tiles
        ],
        out_specs=pl.BlockSpec((R, V), lambda v: (0, 0)),  # resident logits/probs
        compiler_params=pltpu.CompilerParams(
            dimension_semantics=("arbitrary",),
            vmem_limit_bytes=VMEM_LIMIT,
        ),
    )(latents_flat, g, b, embT)


# ---------------------------------------------------------------------------
# Parameter construction (deterministic, synthetic)
# ---------------------------------------------------------------------------
def init_params(key, *, num_layers, num_heads, context_length, E, head_dim,
                num_embeddings, action_dim, history_length):
    HD = num_heads * head_dim
    HA = history_length * action_dim
    HE = history_length * E
    F = 4 * E
    keys = iter(jax.random.split(key, 16))

    def nrm(shape, scale=0.02):
        return jax.random.normal(next(keys), shape, jnp.float32) * scale

    emb = nrm((num_embeddings, E), 1.0)

    wqkv = nrm((num_layers, E, 3 * HD))
    # fold the attention scale 1/sqrt(head_dim) into the Q projection columns
    wqkv = wqkv.at[:, :, :HD].multiply(1.0 / math.sqrt(head_dim))

    params = {
        "embedding_matrix": emb,                               # (V, E) f32, for gather
        "emb_T": emb.T.astype(jnp.bfloat16),                   # pre-transposed once
        "positional_encoding": nrm((context_length, E), 1.0),
        "seq_start_token": nrm((1, E), 1.0),
        "decode_ln_g": jnp.ones((1, E), jnp.float32),
        "decode_ln_b": jnp.zeros((1, E), jnp.float32),
        "hist_ln_g": jnp.ones((1, HA), jnp.float32),
        "hist_ln_b": jnp.zeros((1, HA), jnp.float32),
        "hist_w": nrm((HA, HE)).astype(jnp.bfloat16),
        "hist_b": nrm((1, HE)),
        # per-layer weights stacked along a leading layer axis
        "ln1_g": jnp.ones((num_layers, 1, E), jnp.float32),
        "ln1_b": jnp.zeros((num_layers, 1, E), jnp.float32),
        "wqkv": wqkv.astype(jnp.bfloat16),                     # (nl, E, 3*HD)
        "wo": nrm((num_layers, HD, E)).astype(jnp.bfloat16),
        "ln2_g": jnp.ones((num_layers, 1, E), jnp.float32),
        "ln2_b": jnp.zeros((num_layers, 1, E), jnp.float32),
        "w1": nrm((num_layers, E, F)).astype(jnp.bfloat16),
        "b1": nrm((num_layers, 1, F)),
        "w2": nrm((num_layers, F, E)).astype(jnp.bfloat16),
        "b2": nrm((num_layers, 1, E)),
    }
    return params


# ---------------------------------------------------------------------------
# Full forward (eval mode): returns next-token softmax probabilities
# ---------------------------------------------------------------------------
def transformer_policy_forward(params, history, token_ids, *, num_heads, head_dim,
                               history_length, temperature=1.0):
    N = token_ids.shape[0]
    E = params["embedding_matrix"].shape[1]
    V = params["emb_T"].shape[1]

    # history tokenizer (Pallas kernel)
    hist_flat = history.reshape(N, -1)
    hist_emb = history_tokenizer(
        hist_flat, params["hist_ln_g"], params["hist_ln_b"],
        params["hist_w"], params["hist_b"],
    ).reshape(N, history_length, E)

    # fetch_embeddings (gather glue in plain JAX)
    cleaned = jnp.where(token_ids != -1, token_ids, 0)
    text_emb = params["embedding_matrix"][cleaned] + params["positional_encoding"]
    start = jnp.broadcast_to(params["seq_start_token"].reshape(1, 1, E), (N, 1, E))
    token_emb = jnp.concatenate([start, text_emb], axis=1)

    tokens = jnp.concatenate([hist_emb, token_emb], axis=1)    # (N, L, E)
    L = tokens.shape[1]

    # pad sequence to a multiple of 8 (causally inert pad rows, sliced off later)
    Lp = -(-L // 8) * 8
    if Lp != L:
        tokens = jnp.pad(tokens, ((0, 0), (0, Lp - L), (0, 0)))
    x2 = tokens.reshape(N * Lp, E)

    # fused transformer stack (one Pallas kernel for all layers)
    y2 = transformer_stack(x2, params, num_heads=num_heads, head_dim=head_dim,
                           batch=N, seq=Lp)
    y = y2.reshape(N, Lp, E)[:, history_length:L]              # (N, C+1, E)
    Lc = L - history_length

    # decode head (Pallas kernel); 1/temperature folded into the LN affine params
    inv_t = jnp.float32(1.0 / temperature)
    probs = decode_head(
        y.reshape(N * Lc, E),
        params["decode_ln_g"] * inv_t, params["decode_ln_b"] * inv_t,
        params["emb_T"],
    )
    return probs.reshape(N, Lc, V)


# ---------------------------------------------------------------------------
if __name__ == "__main__":
    # small config
    num_transformer_layers = 2
    num_attention_heads = 2
    context_length = 8
    embedding_dim = 16
    head_embedding_dim = 8
    num_embeddings = 32
    action_dim = 4
    history_length = 2
    N = 2

    key = jax.random.PRNGKey(0)
    k_params, k_hist, k_tok = jax.random.split(key, 3)

    params = init_params(
        k_params,
        num_layers=num_transformer_layers,
        num_heads=num_attention_heads,
        context_length=context_length,
        E=embedding_dim,
        head_dim=head_embedding_dim,
        num_embeddings=num_embeddings,
        action_dim=action_dim,
        history_length=history_length,
    )

    history = jax.random.normal(
        k_hist, (N, history_length, action_dim), jnp.float32
    )
    token_ids = jax.random.randint(
        k_tok, (N, context_length), -1, num_embeddings, dtype=jnp.int32
    )

    probs = transformer_policy_forward(
        params, history, token_ids,
        num_heads=num_attention_heads,
        head_dim=head_embedding_dim,
        history_length=history_length,
        temperature=1.0,
    )
    probs = jax.block_until_ready(probs)

    assert probs.shape == (N, context_length + 1, num_embeddings)
    assert bool(jnp.all(jnp.isfinite(probs)))
    # softmax rows should sum to ~1 (decode uses the exact reciprocal)
    assert bool(jnp.allclose(jnp.sum(probs, axis=-1), 1.0, atol=1e-3))

    print("KERNEL_OK")
</pallas_src>

<mosaic_0001>
module attributes {stable_mosaic.version = 11 : i64} {
  func.func @history_tokenizer_kernel(%arg0: i32, %arg1: memref<2x8xf32, #tpu.memory_space<vmem>>, %arg2: memref<1x8xf32, #tpu.memory_space<vmem>>, %arg3: memref<1x8xf32, #tpu.memory_space<vmem>>, %arg4: memref<8x32xbf16, #tpu.memory_space<vmem>>, %arg5: memref<1x32xf32, #tpu.memory_space<vmem>>, %arg6: memref<2x32xf32, #tpu.memory_space<vmem>>) attributes {dimension_semantics = [#tpu.dimension_semantics<arbitrary>], iteration_bounds = array<i64: 1>, scalar_prefetch = 0 : i64, scratch_operands = 0 : i64, tpu.core_type = #tpu.core_type<tc>, window_params = [{pipeline_mode = #tpu.pipeline_mode<synchronous>, transform_indices = @transform_0, window_bounds = array<i64: 2, 8>}, {pipeline_mode = #tpu.pipeline_mode<synchronous>, transform_indices = @transform_1, window_bounds = array<i64: 1, 8>}, {pipeline_mode = #tpu.pipeline_mode<synchronous>, transform_indices = @transform_2, window_bounds = array<i64: 1, 8>}, {pipeline_mode = #tpu.pipeline_mode<synchronous>, transform_indices = @transform_3, window_bounds = array<i64: 8, 32>}, {pipeline_mode = #tpu.pipeline_mode<synchronous>, transform_indices = @transform_4, window_bounds = array<i64: 1, 32>}, {pipeline_mode = #tpu.pipeline_mode<synchronous>, transform_indices = @transform_5, window_bounds = array<i64: 2, 32>}]} {
    %c0 = arith.constant 0 : index
    %c0_0 = arith.constant 0 : index
    %0 = vector.load %arg1[%c0, %c0_0] : memref<2x8xf32, #tpu.memory_space<vmem>>, vector<2x8xf32>
    %c0_1 = arith.constant 0 : index
    %c0_2 = arith.constant 0 : index
    %1 = vector.load %arg2[%c0_1, %c0_2] : memref<1x8xf32, #tpu.memory_space<vmem>>, vector<1x8xf32>
    %c0_3 = arith.constant 0 : index
    %c0_4 = arith.constant 0 : index
    %2 = vector.load %arg3[%c0_3, %c0_4] : memref<1x8xf32, #tpu.memory_space<vmem>>, vector<1x8xf32>
    %cst = arith.constant dense<0.000000e+00> : vector<2xf32>
    %3 = vector.multi_reduction <add>, %0, %cst [1] : vector<2x8xf32> to vector<2xf32>
    %4 = vector.shape_cast %3 : vector<2xf32> to vector<2x1xf32>
    %cst_5 = arith.constant 8.000000e+00 : f32
    %5 = vector.broadcast %cst_5 : f32 to vector<2x1xf32>
    %6 = arith.divf %4, %5 : vector<2x1xf32>
    %7 = vector.broadcast %6 : vector<2x1xf32> to vector<2x8xf32>
    %8 = arith.subf %0, %7 : vector<2x8xf32>
    %9 = arith.mulf %8, %8 : vector<2x8xf32>
    %cst_6 = arith.constant dense<0.000000e+00> : vector<2xf32>
    %10 = vector.multi_reduction <add>, %9, %cst_6 [1] : vector<2x8xf32> to vector<2xf32>
    %11 = vector.shape_cast %10 : vector<2xf32> to vector<2x1xf32>
    %cst_7 = arith.constant 8.000000e+00 : f32
    %12 = vector.broadcast %cst_7 : f32 to vector<2x1xf32>
    %13 = arith.divf %11, %12 : vector<2x1xf32>
    %14 = vector.broadcast %6 : vector<2x1xf32> to vector<2x8xf32>
    %15 = arith.subf %0, %14 : vector<2x8xf32>
    %cst_8 = arith.constant 9.99999974E-6 : f32
    %16 = vector.broadcast %cst_8 : f32 to vector<2x1xf32>
    %17 = arith.addf %13, %16 : vector<2x1xf32>
    %18 = math.rsqrt %17 : vector<2x1xf32>
    %19 = vector.broadcast %18 : vector<2x1xf32> to vector<2x8xf32>
    %20 = arith.mulf %15, %19 : vector<2x8xf32>
    %21 = vector.broadcast %1 : vector<1x8xf32> to vector<2x8xf32>
    %22 = arith.mulf %20, %21 : vector<2x8xf32>
    %23 = vector.broadcast %2 : vector<1x8xf32> to vector<2x8xf32>
    %24 = arith.addf %22, %23 : vector<2x8xf32>
    %25 = arith.truncf %24 : vector<2x8xf32> to vector<2x8xbf16>
    %c0_9 = arith.constant 0 : index
    %c0_10 = arith.constant 0 : index
    %26 = vector.load %arg4[%c0_9, %c0_10] : memref<8x32xbf16, #tpu.memory_space<vmem>>, vector<8x32xbf16>
    %cst_11 = arith.constant dense<0.000000e+00> : vector<2x32xf32>
    %27 = tpu.matmul %25, %26, %cst_11 {dimension_numbers = #tpu.dot_dimension_numbers<[1], [0], [0], [1], [0, 0, 1, 1], [], []>} : vector<2x8xbf16>, vector<8x32xbf16>, vector<2x32xf32> -> vector<2x32xf32>
    %c0_12 = arith.constant 0 : index
    %c0_13 = arith.constant 0 : index
    %28 = vector.load %arg5[%c0_12, %c0_13] : memref<1x32xf32, #tpu.memory_space<vmem>>, vector<1x32xf32>
    %29 = vector.broadcast %28 : vector<1x32xf32> to vector<2x32xf32>
    %30 = arith.addf %27, %29 : vector<2x32xf32>
    %c0_14 = arith.constant 0 : index
    %c0_15 = arith.constant 0 : index
    %31 = vector.load %arg6[%c0_14, %c0_15] : memref<2x32xf32, #tpu.memory_space<vmem>>, vector<2x32xf32>
    tpu.vector_store %arg6[%c0_14, %c0_15], %30 {strides = array<i32>} : memref<2x32xf32, #tpu.memory_space<vmem>>, vector<2x32xf32>,
    return
  }
  func.func @transform_0(%arg0: i32) -> (i32, i32) {
    %c0_i32 = arith.constant 0 : i32
    %c0_i32_0 = arith.constant 0 : i32
    %c0_i32_1 = arith.constant 0 : i32
    return %c0_i32, %c0_i32_0 : i32, i32
  }
  func.func @transform_1(%arg0: i32) -> (i32, i32) {
    %c0_i32 = arith.constant 0 : i32
    %c0_i32_0 = arith.constant 0 : i32
    %c0_i32_1 = arith.constant 0 : i32
    return %c0_i32, %c0_i32_0 : i32, i32
  }
  func.func @transform_2(%arg0: i32) -> (i32, i32) {
    %c0_i32 = arith.constant 0 : i32
    %c0_i32_0 = arith.constant 0 : i32
    %c0_i32_1 = arith.constant 0 : i32
    return %c0_i32, %c0_i32_0 : i32, i32
  }
  func.func @transform_3(%arg0: i32) -> (i32, i32) {
    %c0_i32 = arith.constant 0 : i32
    %c0_i32_0 = arith.constant 0 : i32
    %c0_i32_1 = arith.constant 0 : i32
    return %c0_i32, %c0_i32_0 : i32, i32
  }
  func.func @transform_4(%arg0: i32) -> (i32, i32) {
    %c0_i32 = arith.constant 0 : i32
    %c0_i32_0 = arith.constant 0 : i32
    %c0_i32_1 = arith.constant 0 : i32
    return %c0_i32, %c0_i32_0 : i32, i32
  }
  func.func @transform_5(%arg0: i32) -> (i32, i32) {
    %c0_i32 = arith.constant 0 : i32
    %c0_i32_0 = arith.constant 0 : i32
    %c0_i32_1 = arith.constant 0 : i32
    return %c0_i32, %c0_i32_0 : i32, i32
  }
}

</mosaic_0001>

<llo_original>
// kernel: tpu_custom_call.1
$region0: #{tpu_custom_call.1}
  #allocation0 [shape = 'u32[]', space=smem, size = 0x4, offset = 0x4, fixed_abs, tag = 'smem constant byte address 0x4 - core index']
  #allocation1 [shape = 'u32[144,128]{1,0:T(1,128)}', space=vmem, size = 0x12000, scoped, tag = 'internal scratch']
  %s0 = inlined_call_operand.hbm [shape: f32[2,8], index: 0, kind: input, shape index: {}]
  %s1 = inlined_call_operand.vmem [shape: f32[1,8], index: 1, kind: input, shape index: {}]
  %s2 = inlined_call_operand.vmem [shape: f32[1,8], index: 2, kind: input, shape index: {}]
  %s3 = inlined_call_operand.vmem [shape: bf16[8,32], index: 3, kind: input, shape index: {}]
  %s4 = inlined_call_operand.vmem [shape: f32[1,32], index: 4, kind: input, shape index: {}]
  %s5 = inlined_call_operand.hbm [shape: f32[2,32], index: 5, kind: output, shape index: {}]
  %s6 = sld [smem:[#allocation0]]
  $region34: #{tpu_custom_call.1} parent=0
    _
  %s8 = ssub.s32 1, %s6
  %s9 = scalar_select 0, %s8, %s6
  $region1: #{tpu_custom_call.1} parent=0
    #allocation2 [shape = 'u8[1024]{0}', space=vmem, size = 0x400, scoped, tag = 'input window, operand 0, single buffered']
    #allocation3 [shape = 's32[1]{0}', space=sflag, size = 0x4, scoped, tag = 'scoped memory for tpu_custom_call.1']
    #allocation4 [shape = 's32[1]{0}', space=sflag, size = 0x4, scoped, tag = 'scoped memory for tpu_custom_call.1']
    #allocation5 [shape = 'u8[1024]{0}', space=vmem, size = 0x400, scoped, tag = 'output window, operand 0, single buffered']
    %10 = vsyncpa [#allocation3], 0
    %11 = vsyncpa [#allocation4], 0
    // Predicated region
    $region2: #{tpu_custom_call.1} parent=1 // pred_check
      _
    $region3: #{tpu_custom_call.1} parent=1 // pred_check_branch
      %13 = sbr.rel (0) target = $region5
    $region4: #{tpu_custom_call.1} parent=1 // pred_region
      %s15 = ssub.s32 32, 32
      %16 = vsyncadd [#allocation3], %s15
      %s18 = sshll.u32 [#allocation2], 4
      %s19 = int_to_ptr.vmem [resolvable:$true] %s18
      %21 = dma.hbm_to_vmem [thread:$0]  %s0, 32, %s19, [#allocation3]
    $region5: #{tpu_custom_call.1} parent=1 // pred_fallthru
      _
    // Predicated region
    $region6: #{tpu_custom_call.1} parent=1 // pred_check
      _
    $region7: #{tpu_custom_call.1} parent=1 // pred_check_branch
      %23 = sbr.rel (0) target = $region9
    $region8: #{tpu_custom_call.1} parent=1 // pred_region
      _
    $region9: #{tpu_custom_call.1} parent=1 // pred_fallthru
      _
    // Predicated region
    $region10: #{tpu_custom_call.1} parent=1 // pred_check
      _
    $region11: #{tpu_custom_call.1} parent=1 // pred_check_branch
      %25 = sbr.rel (0) target = $region13
    $region12: #{tpu_custom_call.1} parent=1 // pred_region
      _
    $region13: #{tpu_custom_call.1} parent=1 // pred_fallthru
      _
    // Predicated region
    $region14: #{tpu_custom_call.1} parent=1 // pred_check
      _
    $region15: #{tpu_custom_call.1} parent=1 // pred_check_branch
      %27 = sbr.rel (0) target = $region17
    $region16: #{tpu_custom_call.1} parent=1 // pred_region
      _
    $region17: #{tpu_custom_call.1} parent=1 // pred_fallthru
      _
    // Predicated region
    $region18: #{tpu_custom_call.1} parent=1 // pred_check
      _
    $region19: #{tpu_custom_call.1} parent=1 // pred_check_branch
      %29 = sbr.rel (0) target = $region21
    $region20: #{tpu_custom_call.1} parent=1 // pred_region
      _
    $region21: #{tpu_custom_call.1} parent=1 // pred_fallthru
      _
    // Predicated region
    $region22: #{tpu_custom_call.1} parent=1 // pred_check
      _
    $region23: #{tpu_custom_call.1} parent=1 // pred_check_branch
      %31 = sbr.rel (0) target = $region25
    $region24: #{tpu_custom_call.1} parent=1 // pred_region
      %32 = dma.done [#allocation3], 32
    $region25: #{tpu_custom_call.1} parent=1 // pred_fallthru
      _
    %v34 = vld [vmem:[#allocation2] sm:$0x3]
    %v35 = vld [vmem:[%s1] sm:$0x1]
    %v36 = vld [vmem:[%s2] sm:$0x1]
    %vm37 = vcmask 58368
    %v38 = vsel %vm37, %v34, 0.0
    %39 = vadd.xlane.f32.xlu0 %v38
    %v40 = vpop.xlane.xlu0 %39
    %v41 = vrcp.pop 8.0
    %v42 = vmul.f32 %v40, %v41
    %v43 = vsub.f32 %v34, %v42
    %v44 = vmul.f32 %v43, %v43
    %v45 = vsel %vm37, %v44, 0.0
    %46 = vadd.xlane.f32.xlu0 %v45
    %v47 = vpop.xlane.xlu0 %46
    %v48 = vmul.f32 %v47, %v41
    %v49 = vadd.f32 %v48, 1e-05
    %v50 = vrsqrt.pop %v49
    %v51 = vmul.f32 %v43, %v50
    %v53 = vlaneseq
    %v54 = vshrl.u32 %v53, 7
    %v55 = vsub.s32 0, %v54
    %v56 = vrot.slane %v35, %v55
    %v58 = vmul.f32 %v51, %v56
    %v60 = vlaneseq
    %v61 = vshrl.u32 %v60, 7
    %v62 = vsub.s32 0, %v61
    %v63 = vrot.slane %v36, %v62
    %v65 = vadd.f32 %v58, %v63
    %v66 = vpack.c.bf16 %v65, %v65
    %v67 = vld [vmem:[%s3] sm:$0xf]
    %v68 = vld [vmem:[%s4] sm:$0x1]
    %v70 = vlaneseq
    %v71 = vshrl.u32 %v70, 7
    %v72 = vsub.s32 0, %v71
    %v73 = vrot.slane %v68, %v72
    %vm75 = vcmask 64512
    %v77 = vsel %vm75, %v66, 0
    %vm79 = vcmask 1043456
    %v81 = vsel %vm79, %v67, 0
    %83 = vmatprep.subr.bf16.mxu0 0
    %84 = vmatpush1.bf16.msra.mxu0 %v81
    %85 = vmatprep.subr.bf16.mxu0 0
    %86 = vmatpush1.bf16.msra.mxu0 0
    %87 = vmatprep.subr.bf16.mxu0 0
    %88 = vmatpush1.bf16.msra.mxu0 0
    %89 = vmatprep.subr.bf16.mxu0 0
    %90 = vmatpush1.bf16.msra.mxu0 0
    %91 = vmatprep.subr.bf16.mxu0 0
    %92 = vmatpush1.bf16.msra.mxu0 0
    %93 = vmatprep.subr.bf16.mxu0 0
    %94 = vmatpush1.bf16.msra.mxu0 0
    %95 = vmatprep.subr.bf16.mxu0 0
    %96 = vmatpush1.bf16.msra.mxu0 0
    %97 = vmatprep.subr.bf16.mxu0 0
    %98 = vmatpush1.bf16.msra.mxu0 0
    %99 = vmatprep.subr.bf16.mxu0 0
    %100 = vmatpush1.bf16.msra.mxu0 0
    %101 = vmatprep.subr.bf16.mxu0 0
    %102 = vmatpush1.bf16.msra.mxu0 0
    %103 = vmatprep.subr.bf16.mxu0 0
    %104 = vmatpush1.bf16.msra.mxu0 0
    %105 = vmatprep.subr.bf16.mxu0 0
    %106 = vmatpush1.bf16.msra.mxu0 0
    %107 = vmatprep.subr.bf16.mxu0 0
    %108 = vmatpush1.bf16.msra.mxu0 0
    %109 = vmatprep.subr.bf16.mxu0 0
    %110 = vmatpush1.bf16.msra.mxu0 0
    %111 = vmatprep.subr.bf16.mxu0 0
    %112 = vmatpush1.bf16.msra.mxu0 0
    %113 = vmatprep.subr.bf16.mxu0 0
    %114 = vmatpush1.bf16.msra.mxu0 0
    %115 = vmatprep.mubr.bf16.mxu0 0
    %116 = vmatmul.mubr.bf16.gmra.mrb[0].mxu0 %v77
    %v117 = vpop.f32.mrb[0].mxu0
    %v118 = vadd.f32 %v73, %v117
    %v119 = vpop.f32.mrb[0].mxu0
    %v120 = vpop.f32.mrb[0].mxu0
    %v121 = vpop.f32.mrb[0].mxu0
    %122 = vdwg.mxu0
    %vm123 = vcmask 254976
    %124 = vst.msk [vmem:[#allocation5] sm:$0x3] %vm123, %v118
    // Predicated region
    $region26: #{tpu_custom_call.1} parent=1 // pred_check
      _
    $region27: #{tpu_custom_call.1} parent=1 // pred_check_branch
      %126 = sbr.rel (0) target = $region29
    $region28: #{tpu_custom_call.1} parent=1 // pred_region
      %s128 = ssub.s32 32, 32
      %129 = vsyncadd [#allocation4], %s128
      %s131 = sshll.u32 [#allocation5], 4
      %s132 = int_to_ptr.vmem [resolvable:$true] %s131
      %134 = dma.vmem_to_hbm [thread:$0]  %s132, 32, %s5, [#allocation4]
    $region29: #{tpu_custom_call.1} parent=1 // pred_fallthru
      _
    // Predicated region
    $region30: #{tpu_custom_call.1} parent=1 // pred_check
      _
    $region31: #{tpu_custom_call.1} parent=1 // pred_check_branch
      %136 = sbr.rel (0) target = $region33
    $region32: #{tpu_custom_call.1} parent=1 // pred_region
      %137 = dma.done [#allocation4], 32
    $region33: #{tpu_custom_call.1} parent=1 // pred_fallthru
      _
    %138 = vsyncpa [#allocation3], 1
    %139 = vsyncpa [#allocation4], 1

</llo_original>
